<compile_context>
chip_gen: v5e
topology: v5e:2x2
jax: 0.10.0
libtpu: 0.0.40
codegen_flags: <defaults>
</compile_context>

<pallas_src>
import functools

import jax
import jax.numpy as jnp
from jax import lax
from jax.experimental import pallas as pl
from jax.experimental.pallas import tpu as pltpu

_F32_MIN = float(jnp.finfo(jnp.float32).min)


def _round_up(x: int, m: int) -> int:
    return (x + m - 1) // m * m


def _cdiv(a: int, b: int) -> int:
    return -(-a // b)


def _vmem_capacity_bytes() -> int:
    try:
        return int(pltpu.get_tpu_info().vmem_capacity_bytes)
    except Exception:
        return 64 << 20  # conservative fallback (v7x per-TensorCore VMEM)


def _lane_group_max(x, n_groups: int):
    """Elementwise (VPU) max over the 128-lane groups of the minor dim -> (..., 128).

    Tree fold over lane-aligned slices: no relayout, no per-step XLU reduce."""
    groups = [x[..., g * 128:(g + 1) * 128] for g in range(n_groups)]
    while len(groups) > 1:
        nxt = [jnp.maximum(groups[i], groups[i + 1])
               for i in range(0, len(groups) - 1, 2)]
        if len(groups) % 2:
            nxt.append(groups[-1])
        groups = nxt
    return groups[0]


def spatial_layer_kernel(x_ref, wt_ref, o_ref, mx_ref, *, length, l_tile):
    # x_ref : (b_tile, c_in, l_tile)   current (batch, channel, length) tile
    # wt_ref: (c_in, c_out_p)          pre-transposed 1x1-conv weight (grid-resident)
    # o_ref : (b_tile, c_out_p)        lane-dense output tile (resident across L axis)
    # mx_ref: (b_tile, c_in, 128) f32  lane-resident running max over the L axis
    l = pl.program_id(1)
    nl = pl.num_programs(1)
    n_groups = l_tile // 128

    @pl.when(l == 0)
    def _init():
        mx_ref[...] = jnp.full(mx_ref.shape, _F32_MIN, dtype=mx_ref.dtype)

    x = x_ref[...].astype(jnp.float32)

    @pl.when(l < nl - 1)
    def _full_tile():
        # Interior tiles are always fully in-bounds: no masking cost.
        mx_ref[...] = jnp.maximum(mx_ref[...], _lane_group_max(x, n_groups))

    @pl.when(l == nl - 1)
    def _last_tile():
        # The last L tile may be ragged; Pallas OOB block contents are
        # unspecified, so mask lanes past the true length with -inf-ish
        # so garbage never wins the running max.
        lane = lax.broadcasted_iota(jnp.int32, x.shape, dimension=2)
        valid = length - l * l_tile
        xm = jnp.where(lane < valid, x, _F32_MIN)
        mx = jnp.maximum(mx_ref[...], _lane_group_max(xm, n_groups))
        mx_ref[...] = mx
        # AdaptiveMaxPool1d(1) finalize: single cross-lane (XLU) reduce, then
        # 1x1 Conv1d (bias-free) as a matmul with the pre-transposed weight,
        # ReLU, Sigmoid.  Runs once per B tile -> off the DMA critical path.
        pooled = jnp.max(mx, axis=-1)                       # (b_tile, c_in)
        y = jnp.dot(pooled, wt_ref[...], preferred_element_type=jnp.float32)
        y = jnp.maximum(y, 0.0)                             # ReLU
        o_ref[...] = jax.nn.sigmoid(y).astype(o_ref.dtype)  # Sigmoid


@functools.partial(jax.jit, static_argnames=("force_b_tile", "force_l_tile"))
def spatial_layer(x, w, *, force_b_tile=None, force_l_tile=None):
    """spatialLayer.forward: sigmoid(relu(conv1x1(maxpool_L(x)))).

    x: (B, inchan, L) float;  w: (channel, inchan) (k=1 Conv1d weight squeezed).
    Returns (B, channel, 1)."""
    if w.ndim == 3:           # accept raw Conv1d weight (channel, inchan, 1)
        w = w[..., 0]
    B, c_in, L = x.shape
    c_out = w.shape[0]
    dt = x.dtype
    itemsize = jnp.dtype(dt).itemsize
    w_itemsize = jnp.dtype(w.dtype).itemsize

    # ---- generation-aware VMEM budget (v5e/v6e: 128 MiB, v7x: 64 MiB/TC) ----
    vmem_cap = _vmem_capacity_bytes()
    vmem_budget = (vmem_cap * 3) // 4                  # headroom for compiler scratch
    x_block_target = min(vmem_budget // 3, 32 << 20)   # 2 double-buffered x blocks + rest

    # ---- tile selection (x block is (b_tile, c_in, l_tile), no padded x copy) ----
    L128 = _round_up(L, 128)
    row_bytes = c_in * itemsize
    max_groups = 128                                   # bounds lane-group unroll (64 KiB/row f32 runs)

    # Length tile first: longest contiguous DMA runs win for the strided NCL layout.
    l_tile = min(L128, 128 * max_groups)
    # Batch tile fills the block budget; keep >=2 parallel B blocks for v7x's 2 TCs.
    b_tile = max(1, x_block_target // (l_tile * row_bytes))
    if B > 8:
        b_tile = min(b_tile, _cdiv(B, 2))

    # Optional overrides (testing / tuning), then sanitize to hardware tiling rules.
    if force_l_tile is not None:
        l_tile = int(force_l_tile)
    if force_b_tile is not None:
        b_tile = int(force_b_tile)
    l_tile = max(128, min(_round_up(l_tile, 128), L128))
    if B <= 8:
        b_tile = B                                     # full-dim exception on out block's 2nd-minor dim
    else:
        b_tile = max(8, min((b_tile // 8) * 8, _round_up(B, 8)))
    # Keep the double-buffered x block within the budget.
    while b_tile * l_tile * row_bytes > x_block_target and l_tile > 128:
        l_tile = max(128, _round_up(l_tile // 2, 128))

    # Lane-dense output channels; pre-transpose + pad the tiny 1x1-conv weight
    # once host-side (no in-kernel .T / relayout).
    c_out_p = _round_up(c_out, 128)
    w_t = jnp.zeros((c_in, c_out_p), dtype=w.dtype).at[:, :c_out].set(w.T)

    grid = (_cdiv(B, b_tile), _cdiv(L, l_tile))

    x_block_bytes = b_tile * c_in * l_tile * itemsize
    vmem_use = (2 * x_block_bytes                       # x, double-buffered
                + 2 * c_in * c_out_p * w_itemsize       # weight
                + 2 * b_tile * c_out_p * itemsize       # output block
                + b_tile * c_in * 128 * 4)              # running-max scratch
    vmem_limit = int(min(max(2 * vmem_use, 16 << 20), (vmem_cap * 4) // 5))

    cost = pl.CostEstimate(
        flops=int(2 * B * c_in * c_out + B * c_in * L),
        transcendentals=int(B * c_out),
        bytes_accessed=int(B * c_in * L * itemsize
                           + B * c_out_p * itemsize
                           + c_in * c_out_p * w_itemsize),
    )

    kernel = functools.partial(spatial_layer_kernel, length=L, l_tile=l_tile)

    out = pl.pallas_call(
        kernel,
        out_shape=jax.ShapeDtypeStruct((B, c_out_p), dt),
        grid_spec=pltpu.PrefetchScalarGridSpec(
            num_scalar_prefetch=0,
            grid=grid,
            in_specs=[
                # x streams over (B, L); c_in is the full dim (no padding).
                pl.BlockSpec((b_tile, c_in, l_tile), lambda b, l: (b, 0, l)),
                # Weight block is grid-resident (constant index_map -> DMA'd once).
                pl.BlockSpec((c_in, c_out_p), lambda b, l: (0, 0)),
            ],
            out_specs=pl.BlockSpec((b_tile, c_out_p), lambda b, l: (b, 0)),
            scratch_shapes=[pltpu.VMEM((b_tile, c_in, 128), jnp.float32)],
        ),
        compiler_params=pltpu.CompilerParams(
            dimension_semantics=("parallel", "arbitrary"),
            vmem_limit_bytes=vmem_limit,
        ),
        cost_estimate=cost,
    )(x, w_t)

    # Strip channel padding; restore the trailing length-1 dim (glue reshape).
    return out[:, :c_out, None]


if __name__ == "__main__":
    key = jax.random.PRNGKey(0)
    kx, kw, kx2, kw2 = jax.random.split(key, 4)

    def reference(x, w):
        pooled = jnp.max(x, axis=-1)
        y = jnp.maximum(jnp.einsum("bi,oi->bo", pooled, w), 0.0)
        return jax.nn.sigmoid(y)[:, :, None]

    # Case 1: auto tiling -> L collapses into a single block, ragged last B block
    # (B=12 with b_tile=8), c_in=4 as a full (unpadded) block dim.
    B, inchan, channel, L = 12, 4, 8, 300
    x = jax.random.normal(kx, (B, inchan, L), dtype=jnp.float32)
    w = jax.random.normal(kw, (channel, inchan), dtype=jnp.float32) / jnp.sqrt(float(inchan))
    out = spatial_layer(x, w)
    jax.block_until_ready(out)
    assert out.shape == (B, channel, 1)
    assert jnp.allclose(out, reference(x, w), atol=1e-5, rtol=1e-5)

    # Case 2: forced small tiles -> multi-step running max over L with an
    # in-kernel-masked ragged last tile (valid = 44 of 128) and 2 parallel B blocks.
    out2 = spatial_layer(x, w, force_b_tile=8, force_l_tile=128)
    jax.block_until_ready(out2)
    assert jnp.allclose(out2, reference(x, w), atol=1e-5, rtol=1e-5)

    # Case 3: small batch (full-dim B block), odd channel count, ragged L tile.
    B3, inchan3, channel3, L3 = 2, 11, 16, 500
    x3 = jax.random.normal(kx2, (B3, inchan3, L3), dtype=jnp.float32)
    w3 = jax.random.normal(kw2, (channel3, inchan3), dtype=jnp.float32) / jnp.sqrt(float(inchan3))
    out3 = spatial_layer(x3, w3, force_l_tile=256)
    jax.block_until_ready(out3)
    assert out3.shape == (B3, channel3, 1)
    assert jnp.allclose(out3, reference(x3, w3), atol=1e-5, rtol=1e-5)

    print("KERNEL_OK")
</pallas_src>

<mosaic_0001>
module attributes {stable_mosaic.version = 11 : i64} {
  func.func @spatial_layer_kernel(%arg0: i32, %arg1: i32, %arg2: memref<8x4x384xf32, #tpu.memory_space<vmem>>, %arg3: memref<4x128xf32, #tpu.memory_space<vmem>>, %arg4: memref<8x128xf32, #tpu.memory_space<vmem>>, %arg5: memref<8x4x128xf32, #tpu.memory_space<vmem>>) attributes {dimension_semantics = [#tpu.dimension_semantics<parallel>, #tpu.dimension_semantics<arbitrary>], iteration_bounds = array<i64: 2, 1>, scalar_prefetch = 0 : i64, scratch_operands = 1 : i64, tpu.core_type = #tpu.core_type<tc>, window_params = [{transform_indices = @transform_0, window_bounds = array<i64: 8, 4, 384>}, {pipeline_mode = #tpu.pipeline_mode<synchronous>, transform_indices = @transform_1, window_bounds = array<i64: 4, 128>}, {transform_indices = @transform_2, window_bounds = array<i64: 8, 128>}]} {
    %c0_i32 = arith.constant 0 : i32
    %0 = arith.cmpi eq, %arg1, %c0_i32 : i32
    %1 = arith.extui %0 : i1 to i32
    %c0_i32_0 = arith.constant 0 : i32
    %2 = arith.cmpi ne, %1, %c0_i32_0 : i32
    scf.if %2 {
      %cst = arith.constant -3.40282347E+38 : f32
      %10 = vector.broadcast %cst : f32 to vector<8x4x128xf32>
      %c0_7 = arith.constant 0 : index
      %c0_8 = arith.constant 0 : index
      %c0_9 = arith.constant 0 : index
      %11 = vector.load %arg5[%c0_7, %c0_8, %c0_9] : memref<8x4x128xf32, #tpu.memory_space<vmem>>, vector<8x4x128xf32>
      tpu.vector_store %arg5[%c0_7, %c0_8, %c0_9], %10 {strides = array<i32>} : memref<8x4x128xf32, #tpu.memory_space<vmem>>, vector<8x4x128xf32>,
    } else {
    }
    %c0 = arith.constant 0 : index
    %c0_1 = arith.constant 0 : index
    %c0_2 = arith.constant 0 : index
    %3 = vector.load %arg2[%c0, %c0_1, %c0_2] : memref<8x4x384xf32, #tpu.memory_space<vmem>>, vector<8x4x384xf32>
    %c0_i32_3 = arith.constant 0 : i32
    %4 = arith.cmpi slt, %arg1, %c0_i32_3 : i32
    %5 = arith.extui %4 : i1 to i32
    %c0_i32_4 = arith.constant 0 : i32
    %6 = arith.cmpi ne, %5, %c0_i32_4 : i32
    scf.if %6 {
      %c0_7 = arith.constant 0 : index
      %c0_8 = arith.constant 0 : index
      %c0_9 = arith.constant 0 : index
      %10 = vector.load %arg5[%c0_7, %c0_8, %c0_9] : memref<8x4x128xf32, #tpu.memory_space<vmem>>, vector<8x4x128xf32>
      %11 = vector.extract_strided_slice %3 {offsets = [0, 0, 0], sizes = [8, 4, 128], strides = [1, 1, 1]} : vector<8x4x384xf32> to vector<8x4x128xf32>
      %12 = vector.extract_strided_slice %3 {offsets = [0, 0, 128], sizes = [8, 4, 128], strides = [1, 1, 1]} : vector<8x4x384xf32> to vector<8x4x128xf32>
      %13 = vector.extract_strided_slice %3 {offsets = [0, 0, 256], sizes = [8, 4, 128], strides = [1, 1, 1]} : vector<8x4x384xf32> to vector<8x4x128xf32>
      %14 = arith.maximumf %11, %12 : vector<8x4x128xf32>
      %15 = arith.maximumf %14, %13 : vector<8x4x128xf32>
      %16 = arith.maximumf %10, %15 : vector<8x4x128xf32>
      %c0_10 = arith.constant 0 : index
      %c0_11 = arith.constant 0 : index
      %c0_12 = arith.constant 0 : index
      %17 = vector.load %arg5[%c0_10, %c0_11, %c0_12] : memref<8x4x128xf32, #tpu.memory_space<vmem>>, vector<8x4x128xf32>
      tpu.vector_store %arg5[%c0_10, %c0_11, %c0_12], %16 {strides = array<i32>} : memref<8x4x128xf32, #tpu.memory_space<vmem>>, vector<8x4x128xf32>,
    } else {
    }
    %c0_i32_5 = arith.constant 0 : i32
    %7 = arith.cmpi eq, %arg1, %c0_i32_5 : i32
    %8 = arith.extui %7 : i1 to i32
    %c0_i32_6 = arith.constant 0 : i32
    %9 = arith.cmpi ne, %8, %c0_i32_6 : i32
    scf.if %9 {
      %10 = tpu.iota {dimensions = array<i32: 2>} : vector<8x4x384xi32>
      %c384_i32 = arith.constant 384 : i32
      %11 = arith.muli %arg1, %c384_i32 : i32
      %c300_i32 = arith.constant 300 : i32
      %12 = arith.subi %c300_i32, %11 : i32
      %13 = vector.broadcast %12 : i32 to vector<8x4x384xi32>
      %14 = arith.cmpi slt, %10, %13 : vector<8x4x384xi32>
      %cst = arith.constant -3.40282347E+38 : f32
      %15 = vector.broadcast %cst : f32 to vector<8x4x384xf32>
      %16 = arith.select %14, %3, %15 : vector<8x4x384xi1>, vector<8x4x384xf32>
      %c0_7 = arith.constant 0 : index
      %c0_8 = arith.constant 0 : index
      %c0_9 = arith.constant 0 : index
      %17 = vector.load %arg5[%c0_7, %c0_8, %c0_9] : memref<8x4x128xf32, #tpu.memory_space<vmem>>, vector<8x4x128xf32>
      %18 = vector.extract_strided_slice %16 {offsets = [0, 0, 0], sizes = [8, 4, 128], strides = [1, 1, 1]} : vector<8x4x384xf32> to vector<8x4x128xf32>
      %19 = vector.extract_strided_slice %16 {offsets = [0, 0, 128], sizes = [8, 4, 128], strides = [1, 1, 1]} : vector<8x4x384xf32> to vector<8x4x128xf32>
      %20 = vector.extract_strided_slice %16 {offsets = [0, 0, 256], sizes = [8, 4, 128], strides = [1, 1, 1]} : vector<8x4x384xf32> to vector<8x4x128xf32>
      %21 = arith.maximumf %18, %19 : vector<8x4x128xf32>
      %22 = arith.maximumf %21, %20 : vector<8x4x128xf32>
      %23 = arith.maximumf %17, %22 : vector<8x4x128xf32>
      %c0_10 = arith.constant 0 : index
      %c0_11 = arith.constant 0 : index
      %c0_12 = arith.constant 0 : index
      %24 = vector.load %arg5[%c0_10, %c0_11, %c0_12] : memref<8x4x128xf32, #tpu.memory_space<vmem>>, vector<8x4x128xf32>
      tpu.vector_store %arg5[%c0_10, %c0_11, %c0_12], %23 {strides = array<i32>} : memref<8x4x128xf32, #tpu.memory_space<vmem>>, vector<8x4x128xf32>,
      %cst_13 = arith.constant dense<0xFF800000> : vector<8x4xf32>
      %25 = vector.multi_reduction <maximumf>, %23, %cst_13 [2] : vector<8x4x128xf32> to vector<8x4xf32>
      %c0_14 = arith.constant 0 : index
      %c0_15 = arith.constant 0 : index
      %26 = vector.load %arg3[%c0_14, %c0_15] : memref<4x128xf32, #tpu.memory_space<vmem>>, vector<4x128xf32>
      %cst_16 = arith.constant dense<0.000000e+00> : vector<8x128xf32>
      %27 = tpu.matmul %25, %26, %cst_16 {dimension_numbers = #tpu.dot_dimension_numbers<[1], [0], [0], [1], [0, 0, 1, 1], [], []>} : vector<8x4xf32>, vector<4x128xf32>, vector<8x128xf32> -> vector<8x128xf32>
      %cst_17 = arith.constant 0.000000e+00 : f32
      %28 = vector.broadcast %cst_17 : f32 to vector<8x128xf32>
      %29 = arith.maximumf %27, %28 : vector<8x128xf32>
      %30 = arith.negf %29 : vector<8x128xf32>
      %31 = math.exp %30 : vector<8x128xf32>
      %cst_18 = arith.constant 1.000000e+00 : f32
      %32 = vector.broadcast %cst_18 : f32 to vector<8x128xf32>
      %33 = arith.addf %32, %31 : vector<8x128xf32>
      %34 = arith.divf %32, %33 : vector<8x128xf32>
      %c0_19 = arith.constant 0 : index
      %c0_20 = arith.constant 0 : index
      %35 = vector.load %arg4[%c0_19, %c0_20] : memref<8x128xf32, #tpu.memory_space<vmem>>, vector<8x128xf32>
      tpu.vector_store %arg4[%c0_19, %c0_20], %34 {strides = array<i32>} : memref<8x128xf32, #tpu.memory_space<vmem>>, vector<8x128xf32>,
    } else {
    }
    return
  }
  func.func @transform_0(%arg0: i32, %arg1: i32) -> (i32, i32, i32) {
    %c0_i32 = arith.constant 0 : i32
    %c0_i32_0 = arith.constant 0 : i32
    return %arg0, %c0_i32, %arg1 : i32, i32, i32
  }
  func.func @transform_1(%arg0: i32, %arg1: i32) -> (i32, i32) {
    %c0_i32 = arith.constant 0 : i32
    %c0_i32_0 = arith.constant 0 : i32
    %c0_i32_1 = arith.constant 0 : i32
    return %c0_i32, %c0_i32_0 : i32, i32
  }
  func.func @transform_2(%arg0: i32, %arg1: i32) -> (i32, i32) {
    %c0_i32 = arith.constant 0 : i32
    %c0_i32_0 = arith.constant 0 : i32
    return %arg0, %c0_i32 : i32, i32
  }
}

</mosaic_0001>

<llo_original>
// kernel: spatial_layer.1
$region0: #{spatial_layer.1}
  #allocation0 [shape = 'u32[]', space=smem, size = 0x4, offset = 0x4, fixed_abs, tag = 'smem constant byte address 0x4 - core index']
  #allocation1 [shape = 'u32[72,128]{1,0:T(1,128)}', space=vmem, size = 0x9000, scoped, tag = 'internal scratch']
  #allocation2 [shape = 'f32[8,4,128]{2,1,0:T(4,128)}', space=vmem, size = 0x4000, scoped, tag = 'scratch operand']
  %s0 = inlined_call_operand.hbm [shape: f32[12,4,300], index: 0, kind: input, shape index: {}]
  %s1 = inlined_call_operand.vmem [shape: f32[4,128], index: 1, kind: input, shape index: {}]
  %s2 = inlined_call_operand.vmem [shape: f32[12,128], index: 2, kind: output, shape index: {}]
  %s3 = sld [smem:[#allocation0]]
  $region57: #{spatial_layer.1} parent=0
    _
  %s5 = ssub.s32 1, %s3
  %s6 = scalar_select 0, %s5, %s3
  $region1: #{spatial_layer.1} parent=0
    #allocation3 [shape = 'u8[98304]{0}', space=vmem, size = 0x18000, scoped, tag = 'input window, operand 0']
    #allocation4 [shape = 's32[2]{0}', space=sflag, size = 0x8, scoped, tag = 'scoped memory for spatial_layer.1']
    %7 = vsyncpa [#allocation4], 0
    %s8 = scalar_lea.sflag [#allocation4], 1
    %9 = vsyncpa %s8, 0
    loop: start=0, step=1, limit=4
    $region2: #{spatial_layer.1} parent=1 // loop_pre_header
      _
    $region3: #{spatial_layer.1} parent=1 // loop_header
      %s11 = sphi 0, %s15
      %p12 = scmp.ge.s32.totalorder %s11, 4
      %s18 = sphi 0, %s30
      %s19 = sphi 0, %s26
      %s20 = sphi 0, %s18
      %s21 = sphi 0, %s19
      %s22 = sphi 0, %s20
      %s23 = sphi 0, %s21
      %s35 = sphi 0, %s37
      %s38 = sphi 0, %s35
      %s39 = sphi 0, %s38
      %s55 = sphi 0, %s39
      %s59 = sphi 0, %s59
      %s61 = sphi 0, %s59
      %s62 = sphi 0, %s61
      %s76 = sphi 0, %s62
      %s82 = sphi 0, %s84
      %s85 = sphi 0, %s82
      %s86 = sphi 0, %s85
      %s102 = sphi 0, %s86
    $region4: #{spatial_layer.1} parent=1 // loop_header_branch
      %14 = sbr.rel (%p12) target = $region8
    $region5: #{spatial_layer.1} parent=1 // loop_body
      %s16 = ssub.s32 %s11, 1
      %s17 = ssub.s32 %s11, 2
      %s24 = sadd.s32 1, %s19
      %p25 = scmp.ge.s32.totalorder %s24, 1
      %s26 = scalar_select %p25, 0, %s24
      %s27 = sadd.s32 1, %s18
      %s28 = scalar_select %p25, %s27, %s18
      %p29 = scmp.ge.s32.totalorder %s28, 2
      %s30 = scalar_select %p29, 0, %s28
      %s31 = ssub.s32 %s18, %s30
      %s32 = ssub.s32 %s19, %s26
      %s33 = sor.u32 %s31, %s32
      %p34 = scmp.eq.s32.totalorder %s33, 0
      %s36 = sadd.s32 %s35, 1
      %s37 = scalar_select %p34, %s35, %s36
      %p40 = pneg %p34
      %p41 = scmp.eq.s32.totalorder %s11, 1
      %p42 = por %p40, %p41
      %p43 = scmp.ne.s32.totalorder %s35, %s38
      %p44 = scmp.eq.s32.totalorder %s11, 0
      %p45 = por %p43, %p44
      %p46 = scmp.ne.s32.totalorder %s35, %s38
      %p47 = scmp.eq.s32.totalorder %s16, 1
      %p48 = por %p46, %p47
      %p49 = scmp.ne.s32.totalorder %s38, %s39
      %p50 = scmp.eq.s32.totalorder %s16, 0
      %p51 = por %p49, %p50
      %p52 = scmp.ne.s32.totalorder %s38, %s39
      %p53 = scmp.eq.s32.totalorder %s17, 1
      %p54 = por %p52, %p53
      %p56 = scmp.ne.s32.totalorder %s39, %s55
      %p57 = scmp.eq.s32.totalorder %s17, 0
      %p58 = por %p56, %p57
      %s60 = sadd.s32 %s59, 1
      %p63 = scmp.eq.s32.totalorder %s11, 1
      %p64 = scmp.ne.s32.totalorder %s59, %s61
      %p65 = scmp.eq.s32.totalorder %s11, 0
      %p66 = por %p64, %p65
      %p67 = scmp.ne.s32.totalorder %s59, %s61
      %p68 = scmp.eq.s32.totalorder %s16, 1
      %p69 = por %p67, %p68
      %p70 = scmp.ne.s32.totalorder %s61, %s62
      %p71 = scmp.eq.s32.totalorder %s16, 0
      %p72 = por %p70, %p71
      %p73 = scmp.ne.s32.totalorder %s61, %s62
      %p74 = scmp.eq.s32.totalorder %s17, 1
      %p75 = por %p73, %p74
      %p77 = scmp.ne.s32.totalorder %s62, %s76
      %p78 = scmp.eq.s32.totalorder %s17, 0
      %p79 = por %p77, %p78
      %s80 = ssub.s32 %s18, %s30
      %p81 = scmp.eq.s32.totalorder %s80, 0
      %s83 = sadd.s32 %s82, 1
      %s84 = scalar_select %p81, %s82, %s83
      %p87 = pneg %p81
      %p88 = scmp.eq.s32.totalorder %s11, 1
      %p89 = por %p87, %p88
      %p90 = scmp.ne.s32.totalorder %s82, %s85
      %p91 = scmp.eq.s32.totalorder %s11, 0
      %p92 = por %p90, %p91
      %p93 = scmp.ne.s32.totalorder %s82, %s85
      %p94 = scmp.eq.s32.totalorder %s16, 1
      %p95 = por %p93, %p94
      %p96 = scmp.ne.s32.totalorder %s85, %s86
      %p97 = scmp.eq.s32.totalorder %s16, 0
      %p98 = por %p96, %p97
      %p99 = scmp.ne.s32.totalorder %s85, %s86
      %p100 = scmp.eq.s32.totalorder %s17, 1
      %p101 = por %p99, %p100
      %p103 = scmp.ne.s32.totalorder %s86, %s102
      %p104 = scmp.eq.s32.totalorder %s17, 0
      %p105 = por %p103, %p104
      %p106 = scmp.le.s32.totalorder 1, %s11
      %p107 = scmp.lt.s32.totalorder %s11, 3
      %p108 = pnand %p106, %p107
      %p109 = pneg %p108
      // Predicated region
      $region9: #{spatial_layer.1} parent=5 // pred_check
        _
      $region10: #{spatial_layer.1} parent=5 // pred_check_branch
        %111 = sbr.rel (%p108) target = $region12
      $region11: #{spatial_layer.1} parent=5 // pred_region
        %s112 = ssub.s32 %s11, 1
        // Predicated region
        $region13: #{spatial_layer.1} parent=11 // pred_check
          %p113 = pneg %p72
        $region14: #{spatial_layer.1} parent=11 // pred_check_branch
          %115 = sbr.rel (%p113) target = $region16
        $region15: #{spatial_layer.1} parent=11 // pred_region
          _
        $region16: #{spatial_layer.1} parent=11 // pred_fallthru
          _
      $region12: #{spatial_layer.1} parent=5 // pred_fallthru
        _
      %p116 = scmp.lt.s32.totalorder %s11, 2
      // Predicated region
      $region17: #{spatial_layer.1} parent=5 // pred_check
        %p117 = pneg %p116
      $region18: #{spatial_layer.1} parent=5 // pred_check_branch
        %119 = sbr.rel (%p117) target = $region20
      $region19: #{spatial_layer.1} parent=5 // pred_region
        // Predicated region
        $region21: #{spatial_layer.1} parent=19 // pred_check
          %p120 = pneg %p45
        $region22: #{spatial_layer.1} parent=19 // pred_check_branch
          %122 = sbr.rel (%p120) target = $region24
        $region23: #{spatial_layer.1} parent=19 // pred_region
          %s123 = sand.u32 %s35, 1
          %s124 = scalar_lea.sflag [#allocation4], %s123
          %s125 = sand.u32 %s35, 1
          %s126 = smul.addr %s125, 96
          %s127 = scalar_lea.vmem [#allocation3], %s126
          %s128 = smul.u32 8, %s18
          %s129 = smul.u32 3, %s19
          %s130 = ssub.s32 12, %s128
          %p131 = scmp.lt.s32.totalorder %s130, 8
          %s132 = scalar_select %p131, %s130, 8
          %s133 = smul.u32 4, %s132
          %s134 = smul.u32 %s133, 3
          %s135 = ssub.s32 96, %s134
          %s136 = sshll.u32 %s135, 4
          %137 = vsyncadd %s124, %s136
          %p138 = scmp.ne.s32.totalorder 0, %s134
          %s139 = smul.addr %s128, 3
          %s140 = sadd.s32 %s129, %s139
          %s141 = smul.addr %s140, 4
          %s142 = scalar_lea.hbm %s0, %s141
          %s143 = smul.u32 12, %s132
          %s144 = sshll.u32 %s142, 4
          %s145 = int_to_ptr.hbm [resolvable:$true] %s144
          %s146 = sshll.u32 %s127, 4
          %s147 = int_to_ptr.vmem [resolvable:$true] %s146
          %s148 = sshll.u32 %s143, 4
          %152 = dma.hbm_to_vmem [thread:$0]  (%p138), %s145, %s148, %s147, %s124, 192, 192, 12
        $region24: #{spatial_layer.1} parent=19 // pred_fallthru
          _
      $region20: #{spatial_layer.1} parent=5 // pred_fallthru
        _
      %p153 = scmp.le.s32.totalorder 1, %s11
      %p154 = scmp.lt.s32.totalorder %s11, 3
      %p155 = pnand %p153, %p154
      %p156 = pneg %p155
      // Predicated region
      $region25: #{spatial_layer.1} parent=5 // pred_check
        _
      $region26: #{spatial_layer.1} parent=5 // pred_check_branch
        %158 = sbr.rel (%p155) target = $region28
      $region27: #{spatial_layer.1} parent=5 // pred_region
        %s159 = ssub.s32 %s11, 1
        %s160 = sand.u32 %s38, 1
        %s161 = scalar_lea.sflag [#allocation4], %s160
        %s162 = sand.u32 %s38, 1
        %s163 = smul.addr %s162, 96
        %s164 = scalar_lea.vmem [#allocation3], %s163
        // Predicated region
        $region29: #{spatial_layer.1} parent=27 // pred_check
          %p165 = pneg %p51
        $region30: #{spatial_layer.1} parent=27 // pred_check_branch
          %167 = sbr.rel (%p165) target = $region32
        $region31: #{spatial_layer.1} parent=27 // pred_region
          %169 = dma.done %s161, 1536
        $region32: #{spatial_layer.1} parent=27 // pred_fallthru
          _
        %s170 = sand.u32 %s38, 1
        %s171 = scalar_lea.sflag [#allocation4], %s170
        %s172 = sand.u32 %s38, 1
        %s173 = smul.addr %s172, 96
        %s174 = scalar_lea.vmem [#allocation3], %s173
        %p175 = pneg %p51
        %p176 = pneg %p48
        %p177 = pneg %p72
        %p178 = pneg %p69
        %p179 = pneg %p98
        %p180 = pneg %p95
        %p181 = scmp.lt.s32.totalorder %s20, 1
        %s182 = scalar_select %p181, %s20, 1
        %s183 = smul.addr %s182, 8
        %s184 = scalar_lea.vmem %s2, %s183
        %s185 = smul.u32 8, %s20
        %s186 = smul.u32 3, %s21
        %s187 = ssub.s32 12, %s185
        %p188 = scmp.lt.s32.totalorder %s187, 8
        %s189 = scalar_select %p188, %s187, 8
        %s190 = smul.u32 4, %s189
        %s191 = smul.u32 %s190, 3
        %p192 = scmp.lt.s32.totalorder %s20, 1
        %s193 = scalar_select %p192, %s20, 1
        %s194 = smul.addr %s193, 8
        %s195 = scalar_lea.vmem %s2, %s194
        %p196 = scmp.eq.s32.totalorder %s21, 0
        // Predicated region
        $region33: #{spatial_layer.1} parent=27 // pred_check
          %p197 = pneg %p196
        $region34: #{spatial_layer.1} parent=27 // pred_check_branch
          %199 = sbr.rel (%p197) target = $region36
        $region35: #{spatial_layer.1} parent=27 // pred_region
          %200 = vst [vmem:[#allocation2] sm:$0xf] -3.4028235e+38
          %201 = vst [vmem:[#allocation2 + $0x4] sm:$0xf] -3.4028235e+38
          %202 = vst [vmem:[#allocation2 + $0x8] sm:$0xf] -3.4028235e+38
          %203 = vst [vmem:[#allocation2 + $0xc] sm:$0xf] -3.4028235e+38
          %204 = vst [vmem:[#allocation2 + $0x10] sm:$0xf] -3.4028235e+38
          %205 = vst [vmem:[#allocation2 + $0x14] sm:$0xf] -3.4028235e+38
          %206 = vst [vmem:[#allocation2 + $0x18] sm:$0xf] -3.4028235e+38
          %207 = vst [vmem:[#allocation2 + $0x1c] sm:$0xf] -3.4028235e+38
        $region36: #{spatial_layer.1} parent=27 // pred_fallthru
          _
        %v208 = vld [vmem:[%s164] sm:$0xff]
        %v209 = vld [vmem:[%s164 + $0x8] sm:$0xf]
        %v210 = vld [vmem:[%s164 + $0xc] sm:$0xff]
        %v211 = vld [vmem:[%s164 + $0x14] sm:$0xf]
        %v212 = vld [vmem:[%s164 + $0x18] sm:$0xff]
        %v213 = vld [vmem:[%s164 + $0x20] sm:$0xf]
        %v214 = vld [vmem:[%s164 + $0x24] sm:$0xff]
        %v215 = vld [vmem:[%s164 + $0x2c] sm:$0xf]
        %v216 = vld [vmem:[%s164 + $0x30] sm:$0xff]
        %v217 = vld [vmem:[%s164 + $0x38] sm:$0xf]
        %v218 = vld [vmem:[%s164 + $0x3c] sm:$0xff]
        %v219 = vld [vmem:[%s164 + $0x44] sm:$0xf]
        %v220 = vld [vmem:[%s164 + $0x48] sm:$0xff]
        %v221 = vld [vmem:[%s164 + $0x50] sm:$0xf]
        %v222 = vld [vmem:[%s164 + $0x54] sm:$0xff]
        %v223 = vld [vmem:[%s164 + $0x5c] sm:$0xf]
        %p224 = scmp.lt.s32.totalorder %s21, 0
        // Predicated region
        $region37: #{spatial_layer.1} parent=27 // pred_check
          %p225 = pneg %p224
        $region38: #{spatial_layer.1} parent=27 // pred_check_branch
          %227 = sbr.rel (%p225) target = $region40
        $region39: #{spatial_layer.1} parent=27 // pred_region
          %v228 = vld [vmem:[#allocation2] sm:$0xf]
          %v229 = vld [vmem:[#allocation2 + $0x4] sm:$0xf]
          %v230 = vld [vmem:[#allocation2 + $0x8] sm:$0xf]
          %v231 = vld [vmem:[#allocation2 + $0xc] sm:$0xf]
          %v232 = vld [vmem:[#allocation2 + $0x10] sm:$0xf]
          %v233 = vld [vmem:[#allocation2 + $0x14] sm:$0xf]
          %v234 = vld [vmem:[#allocation2 + $0x18] sm:$0xf]
          %v235 = vld [vmem:[#allocation2 + $0x1c] sm:$0xf]
          %v244 = vrot.slane %v208, 4
          %v245 = vrot.slane %v210, 4
          %v246 = vrot.slane %v212, 4
          %v247 = vrot.slane %v214, 4
          %v248 = vrot.slane %v216, 4
          %v249 = vrot.slane %v218, 4
          %v250 = vrot.slane %v220, 4
          %v251 = vrot.slane %v222, 4
          %v260 = vmax.f32 %v208, %v244
          %v261 = vmax.f32 %v210, %v245
          %v262 = vmax.f32 %v212, %v246
          %v263 = vmax.f32 %v214, %v247
          %v264 = vmax.f32 %v216, %v248
          %v265 = vmax.f32 %v218, %v249
          %v266 = vmax.f32 %v220, %v250
          %v267 = vmax.f32 %v222, %v251
          %v268 = vmax.f32 %v260, %v209
          %v269 = vmax.f32 %v261, %v211
          %v270 = vmax.f32 %v262, %v213
          %v271 = vmax.f32 %v263, %v215
          %v272 = vmax.f32 %v264, %v217
          %v273 = vmax.f32 %v265, %v219
          %v274 = vmax.f32 %v266, %v221
          %v275 = vmax.f32 %v267, %v223
          %v276 = vmax.f32 %v228, %v268
          %v277 = vmax.f32 %v229, %v269
          %v278 = vmax.f32 %v230, %v270
          %v279 = vmax.f32 %v231, %v271
          %v280 = vmax.f32 %v232, %v272
          %v281 = vmax.f32 %v233, %v273
          %v282 = vmax.f32 %v234, %v274
          %v283 = vmax.f32 %v235, %v275
          %284 = vst [vmem:[#allocation2] sm:$0xf] %v276
          %285 = vst [vmem:[#allocation2 + $0x4] sm:$0xf] %v277
          %286 = vst [vmem:[#allocation2 + $0x8] sm:$0xf] %v278
          %287 = vst [vmem:[#allocation2 + $0xc] sm:$0xf] %v279
          %288 = vst [vmem:[#allocation2 + $0x10] sm:$0xf] %v280
          %289 = vst [vmem:[#allocation2 + $0x14] sm:$0xf] %v281
          %290 = vst [vmem:[#allocation2 + $0x18] sm:$0xf] %v282
          %291 = vst [vmem:[#allocation2 + $0x1c] sm:$0xf] %v283
        $region40: #{spatial_layer.1} parent=27 // pred_fallthru
          _
        // Predicated region
        $region41: #{spatial_layer.1} parent=27 // pred_check
          %p292 = pneg %p196
        $region42: #{spatial_layer.1} parent=27 // pred_check_branch
          %294 = sbr.rel (%p292) target = $region44
        $region43: #{spatial_layer.1} parent=27 // pred_region
          %v295 = vlaneseq
          %v296 = vand.u32 %v295, 127
          %v297 = vadd.s32 %v296, 128
          %v298 = vadd.s32 %v296, 256
          %s299 = smul.u32 %s21, 384
          %s300 = ssub.s32 300, %s299
          %v301 = vstv %s300
          %vm302 = vcmp.lt.s32.totalorder %v296, %v301
          %vm303 = vcmp.lt.s32.totalorder %v297, %v301
          %vm304 = vcmp.lt.s32.totalorder %v298, %v301
          %321 = vst [vmem:[#allocation1] ss:$2 sm:$0xff] %v208
          %s322 = scalar_lea.vmem [#allocation1], 16
          %323 = vst [vmem:[%s322] ss:$2 sm:$0xff] %v209
          %v324 = vld.sshfl [vmem:[#allocation1] sm:$0xff pattern:$0x75316420]
          %v325 = vld.sshfl [vmem:[#allocation1 + $0x8] sm:$0xff pattern:$0x75316420]
          %v326 = vld.sshfl [vmem:[#allocation1 + $0x10] sm:$0xff pattern:$0x75316420]
          %s327 = scalar_lea.vmem [#allocation1], 32
          %328 = vst [vmem:[%s327] ss:$2 sm:$0xff] %v210
          %s329 = scalar_lea.vmem [#allocation1], 48
          %330 = vst [vmem:[%s329] ss:$2 sm:$0xff] %v211
          %v331 = vld.sshfl [vmem:[#allocation1 + $0x20] sm:$0xff pattern:$0x75316420]
          %v332 = vld.sshfl [vmem:[#allocation1 + $0x28] sm:$0xff pattern:$0x75316420]
          %v333 = vld.sshfl [vmem:[#allocation1 + $0x30] sm:$0xff pattern:$0x75316420]
          %334 = vst [vmem:[#allocation1] ss:$2 sm:$0xff] %v212
          %335 = vst [vmem:[%s322] ss:$2 sm:$0xff] %v213
          %v336 = vld.sshfl [vmem:[#allocation1] sm:$0xff pattern:$0x75316420]
          %v337 = vld.sshfl [vmem:[#allocation1 + $0x8] sm:$0xff pattern:$0x75316420]
          %v338 = vld.sshfl [vmem:[#allocation1 + $0x10] sm:$0xff pattern:$0x75316420]
          %339 = vst [vmem:[%s327] ss:$2 sm:$0xff] %v214
          %340 = vst [vmem:[%s329] ss:$2 sm:$0xff] %v215
          %v341 = vld.sshfl [vmem:[#allocation1 + $0x20] sm:$0xff pattern:$0x75316420]
          %v342 = vld.sshfl [vmem:[#allocation1 + $0x28] sm:$0xff pattern:$0x75316420]
          %v343 = vld.sshfl [vmem:[#allocation1 + $0x30] sm:$0xff pattern:$0x75316420]
          %344 = vst [vmem:[#allocation1] ss:$2 sm:$0xff] %v216
          %345 = vst [vmem:[%s322] ss:$2 sm:$0xff] %v217
          %v346 = vld.sshfl [vmem:[#allocation1] sm:$0xff pattern:$0x75316420]
          %v347 = vld.sshfl [vmem:[#allocation1 + $0x8] sm:$0xff pattern:$0x75316420]
          %v348 = vld.sshfl [vmem:[#allocation1 + $0x10] sm:$0xff pattern:$0x75316420]
          %349 = vst [vmem:[%s327] ss:$2 sm:$0xff] %v218
          %350 = vst [vmem:[%s329] ss:$2 sm:$0xff] %v219
          %v351 = vld.sshfl [vmem:[#allocation1 + $0x20] sm:$0xff pattern:$0x75316420]
          %v352 = vld.sshfl [vmem:[#allocation1 + $0x28] sm:$0xff pattern:$0x75316420]
          %v353 = vld.sshfl [vmem:[#allocation1 + $0x30] sm:$0xff pattern:$0x75316420]
          %354 = vst [vmem:[#allocation1] ss:$2 sm:$0xff] %v220
          %355 = vst [vmem:[%s322] ss:$2 sm:$0xff] %v221
          %v356 = vld.sshfl [vmem:[#allocation1] sm:$0xff pattern:$0x75316420]
          %v357 = vld.sshfl [vmem:[#allocation1 + $0x8] sm:$0xff pattern:$0x75316420]
          %v358 = vld.sshfl [vmem:[#allocation1 + $0x10] sm:$0xff pattern:$0x75316420]
          %359 = vst [vmem:[%s327] ss:$2 sm:$0xff] %v222
          %360 = vst [vmem:[%s329] ss:$2 sm:$0xff] %v223
          %v361 = vld.sshfl [vmem:[#allocation1 + $0x20] sm:$0xff pattern:$0x75316420]
          %v362 = vld.sshfl [vmem:[#allocation1 + $0x28] sm:$0xff pattern:$0x75316420]
          %v363 = vld.sshfl [vmem:[#allocation1 + $0x30] sm:$0xff pattern:$0x75316420]
          %v388 = vsel %vm302, %v324, -3.4028235e+38
          %v389 = vsel %vm303, %v325, -3.4028235e+38
          %v390 = vsel %vm304, %v326, -3.4028235e+38
          %v391 = vsel %vm302, %v331, -3.4028235e+38
          %v392 = vsel %vm303, %v332, -3.4028235e+38
          %v393 = vsel %vm304, %v333, -3.4028235e+38
          %v394 = vsel %vm302, %v336, -3.4028235e+38
          %v395 = vsel %vm303, %v337, -3.4028235e+38
          %v396 = vsel %vm304, %v338, -3.4028235e+38
          %v397 = vsel %vm302, %v341, -3.4028235e+38
          %v398 = vsel %vm303, %v342, -3.4028235e+38
          %v399 = vsel %vm304, %v343, -3.4028235e+38
          %v400 = vsel %vm302, %v346, -3.4028235e+38
          %v401 = vsel %vm303, %v347, -3.4028235e+38
          %v402 = vsel %vm304, %v348, -3.4028235e+38
          %v403 = vsel %vm302, %v351, -3.4028235e+38
          %v404 = vsel %vm303, %v352, -3.4028235e+38
          %v405 = vsel %vm304, %v353, -3.4028235e+38
          %v406 = vsel %vm302, %v356, -3.4028235e+38
          %v407 = vsel %vm303, %v357, -3.4028235e+38
          %v408 = vsel %vm304, %v358, -3.4028235e+38
          %v409 = vsel %vm302, %v361, -3.4028235e+38
          %v410 = vsel %vm303, %v362, -3.4028235e+38
          %v411 = vsel %vm304, %v363, -3.4028235e+38
          %v412 = vld [vmem:[#allocation2] sm:$0xf]
          %v413 = vld [vmem:[#allocation2 + $0x4] sm:$0xf]
          %v414 = vld [vmem:[#allocation2 + $0x8] sm:$0xf]
          %v415 = vld [vmem:[#allocation2 + $0xc] sm:$0xf]
          %v416 = vld [vmem:[#allocation2 + $0x10] sm:$0xf]
          %v417 = vld [vmem:[#allocation2 + $0x14] sm:$0xf]
          %v418 = vld [vmem:[#allocation2 + $0x18] sm:$0xf]
          %v419 = vld [vmem:[#allocation2 + $0x1c] sm:$0xf]
          %v420 = vmax.f32 %v388, %v389
          %v421 = vmax.f32 %v391, %v392
          %v422 = vmax.f32 %v394, %v395
          %v423 = vmax.f32 %v397, %v398
          %v424 = vmax.f32 %v400, %v401
          %v425 = vmax.f32 %v403, %v404
          %v426 = vmax.f32 %v406, %v407
          %v427 = vmax.f32 %v409, %v410
          %v428 = vmax.f32 %v420, %v390
          %v429 = vmax.f32 %v421, %v393
          %v430 = vmax.f32 %v422, %v396
          %v431 = vmax.f32 %v423, %v399
          %v432 = vmax.f32 %v424, %v402
          %v433 = vmax.f32 %v425, %v405
          %v434 = vmax.f32 %v426, %v408
          %v435 = vmax.f32 %v427, %v411
          %v436 = vmax.f32 %v412, %v428
          %v437 = vmax.f32 %v413, %v429
          %v438 = vmax.f32 %v414, %v430
          %v439 = vmax.f32 %v415, %v431
          %v440 = vmax.f32 %v416, %v432
          %v441 = vmax.f32 %v417, %v433
          %v442 = vmax.f32 %v418, %v434
          %v443 = vmax.f32 %v419, %v435
          %444 = vst [vmem:[#allocation2] sm:$0xf] %v436
          %445 = vst [vmem:[#allocation2 + $0x4] sm:$0xf] %v437
          %446 = vst [vmem:[#allocation2 + $0x8] sm:$0xf] %v438
          %447 = vst [vmem:[#allocation2 + $0xc] sm:$0xf] %v439
          %448 = vst [vmem:[#allocation2 + $0x10] sm:$0xf] %v440
          %449 = vst [vmem:[#allocation2 + $0x14] sm:$0xf] %v441
          %450 = vst [vmem:[#allocation2 + $0x18] sm:$0xf] %v442
          %451 = vst [vmem:[#allocation2 + $0x1c] sm:$0xf] %v443
          %vm452 = vcmask 1043456
          %v453 = vsel %vm452, %v436, -inf
          %454 = vmax.xlane.f32.xlu0 %v453
          %v455 = vpop.xlane.xlu0 %454
          %v456 = vsel %vm452, %v437, -inf
          %457 = vmax.xlane.f32.xlu0 %v456
          %v458 = vpop.xlane.xlu0 %457
          %v459 = vsel %vm452, %v438, -inf
          %460 = vmax.xlane.f32.xlu0 %v459
          %v461 = vpop.xlane.xlu0 %460
          %v462 = vsel %vm452, %v439, -inf
          %463 = vmax.xlane.f32.xlu0 %v462
          %v464 = vpop.xlane.xlu0 %463
          %v465 = vsel %vm452, %v440, -inf
          %466 = vmax.xlane.f32.xlu0 %v465
          %v467 = vpop.xlane.xlu0 %466
          %v468 = vsel %vm452, %v441, -inf
          %469 = vmax.xlane.f32.xlu0 %v468
          %v470 = vpop.xlane.xlu0 %469
          %v471 = vsel %vm452, %v442, -inf
          %472 = vmax.xlane.f32.xlu0 %v471
          %v473 = vpop.xlane.xlu0 %472
          %v474 = vsel %vm452, %v443, -inf
          %475 = vmax.xlane.f32.xlu0 %v474
          %v476 = vpop.xlane.xlu0 %475
          %v477 = vld [vmem:[%s1] sm:$0xf]
          %v486 = vperm.slane %v455, %v296
          %v487 = vperm.slane %v458, %v296
          %v488 = vperm.slane %v461, %v296
          %v489 = vperm.slane %v464, %v296
          %v490 = vperm.slane %v467, %v296
          %v491 = vperm.slane %v470, %v296
          %v492 = vperm.slane %v473, %v296
          %v493 = vperm.slane %v476, %v296
          %vm494 = vcmask 1041409
          %v495 = vsel %vm494, %v487, %v486
          %vm496 = vcmask 1042434
          %v497 = vsel %vm496, %v488, %v495
          %vm498 = vcmask 1043459
          %v499 = vsel %vm498, %v489, %v497
          %vm500 = vcmask 1044484
          %v501 = vsel %vm500, %v490, %v499
          %vm502 = vcmask 1045509
          %v503 = vsel %vm502, %v491, %v501
          %vm504 = vcmask 1046534
          %v505 = vsel %vm504, %v492, %v503
          %vm506 = vcmask 1047559
          %v507 = vsel %vm506, %v493, %v505
          %vm508 = vcmask 31744
          %v509 = vsel %vm508, %v507, 0
          %v512 = vsel %vm452, %v477, 0
          %514 = vmatpush.msra.mxu0 0.0
          %515 = vmatpush.msra.mxu0 0.0
          %516 = vmatpush.msra.mxu0 0.0
          %517 = vmatpush.msra.mxu0 0.0
          %518 = vmatpush.msra.mxu0 0.0
          %519 = vmatpush.msra.mxu0 0.0
          %520 = vmatpush.msra.mxu0 0.0
          %521 = vmatpush.msra.mxu0 0.0
          %522 = vmatpush.msra.mxu0 0.0
          %523 = vmatpush.msra.mxu0 0.0
          %524 = vmatpush.msra.mxu0 0.0
          %525 = vmatpush.msra.mxu0 0.0
          %526 = vmatpush.msra.mxu0 0.0
          %527 = vmatpush.msra.mxu0 0.0
          %528 = vmatpush.msra.mxu0 0.0
          %529 = vmatpush.msra.mxu0 %v512
          %530 = vmatmul.f32.gmra.mxu0 %v509
          %v531 = vpop.f32.mrf.mxu0
          %v532 = vadd.f32 0.0, %v531
          %533 = vdwg.mxu0
          %v534 = vmax.f32 %v532, 0.0
          %v535 = vxor.u32 %v534, 2147483648
          %v536 = vmul.f32 %v535, 1.442695
          %v537 = vpow.pop %v536
          %v538 = vadd.f32 %v537, 1.0
          %v539 = vrcp.pop %v538
          %v540 = vmul.f32 %v538, %v539
          %v541 = vsub.f32 1.0, %v540
          %v542 = vmul.f32 %v539, %v541
          %v543 = vadd.f32 %v539, %v542
          %vm544 = vweird.f32 %v538
          %vm545 = vweird.f32 %v539
          %vm546 = vmor %vm544, %vm545
          %v547 = vsel %vm546, %v539, %v543
          %v548 = vand.u32 2147483647, %v538
          %vm549 = vcmp.eq.f32.partialorder %v548, 8.507059e+37
          %v550 = vand.u32 %v538, 2147483648
          %v551 = vor.u32 1.1754944e-38, %v550
          %v552 = vsel %vm549, %v551, %v547
          %v553 = vmul.f32 1.0, %v552
          %554 = vst [vmem:[%s195] sm:$0xff] %v553
        $region44: #{spatial_layer.1} parent=27 // pred_fallthru
          _
        %p555 = scmp.lt.s32.totalorder %s20, 1
        %s556 = scalar_select %p555, %s20, 1
        %s557 = smul.addr %s556, 8
        %s558 = scalar_lea.vmem %s2, %s557
        // Predicated region
        $region45: #{spatial_layer.1} parent=27 // pred_check
          %p559 = pneg %p95
        $region46: #{spatial_layer.1} parent=27 // pred_check_branch
          %561 = sbr.rel (%p559) target = $region48
        $region47: #{spatial_layer.1} parent=27 // pred_region
          _
        $region48: #{spatial_layer.1} parent=27 // pred_fallthru
          _
      $region28: #{spatial_layer.1} parent=5 // pred_fallthru
        _
      %p562 = scmp.le.s32.totalorder 2, %s11
      // Predicated region
      $region49: #{spatial_layer.1} parent=5 // pred_check
        %p563 = pneg %p562
      $region50: #{spatial_layer.1} parent=5 // pred_check_branch
        %565 = sbr.rel (%p563) target = $region52
      $region51: #{spatial_layer.1} parent=5 // pred_region
        %s566 = ssub.s32 %s11, 2
        // Predicated region
        $region53: #{spatial_layer.1} parent=51 // pred_check
          %p567 = pneg %p101
        $region54: #{spatial_layer.1} parent=51 // pred_check_branch
          %569 = sbr.rel (%p567) target = $region56
        $region55: #{spatial_layer.1} parent=51 // pred_region
          %p570 = scmp.lt.s32.totalorder %s22, 1
          %s571 = scalar_select %p570, %s22, 1
          %s572 = smul.addr %s571, 8
          %s573 = scalar_lea.vmem %s2, %s572
        $region56: #{spatial_layer.1} parent=51 // pred_fallthru
          _
      $region52: #{spatial_layer.1} parent=5 // pred_fallthru
        _
    $region6: #{spatial_layer.1} parent=1 // loop_footer
      %s15 = sadd.s32 1, %s11
    $region7: #{spatial_layer.1} parent=1 // loop_footer_branch
      %10 = sbr.rel target = $region3
    $region8: #{spatial_layer.1} parent=1 // loop_exit
      _
    %574 = vsyncpa [#allocation4], 1
    %s575 = scalar_lea.sflag [#allocation4], 1
    %576 = vsyncpa %s575, 1

</llo_original>
